<compile_context>
chip_gen: v7x
topology: tpu7x:2x2x1
jax: 0.10.0
libtpu: 0.0.40
codegen_flags: <defaults>
</compile_context>

<pallas_src>
import jax
import jax.numpy as jnp
from jax.experimental import pallas as pl
from jax.experimental.pallas import tpu as pltpu

_VMEM_LIMIT = 32 * 1024 * 1024


# ----------------------------------------------------------------------------
# Kernel 1: ConvTranspose2d, kernel_size=2, stride=2 (no output overlap).
# out[n, 2i+di, 2j+dj, co] = sum_ci x[n, i, j, ci] * w[di, dj, ci, co] + b[co]
# One matmul per di with the (dj, co) taps fused into a lane-dense N=2*Cout
# output; the output block is (1, H, 2, W, 2*Cout), so the interleave back to
# (N, 2H, 2W, Cout) is a free row-major reshape in the wrapper.
# ----------------------------------------------------------------------------
def deconv2x2_kernel(x_ref, w_ref, b_ref, o_ref):
    # x_ref: (1, H, W, Cin)   w_ref: (2, Cin, 2*Cout)  [columns = (dj, co)]
    # b_ref: (1, 2*Cout)      o_ref: (1, H, 2, W, 2*Cout)
    H, W, Cin = x_ref.shape[1], x_ref.shape[2], x_ref.shape[3]
    C2 = w_ref.shape[2]
    xm = x_ref[0].reshape(H * W, Cin)
    b = b_ref[...]  # (1, 2*Cout) broadcasts over rows
    for di in range(2):
        y = jnp.dot(xm, w_ref[di], preferred_element_type=jnp.float32) + b
        o_ref[0, :, di:di + 1, :, :] = y.reshape(H, 1, W, C2)


def deconv2x2(x_nhwc, w, b):
    # w: (2, 2, Cin, Cout) = (di, dj, ci, co);  b: (Cout,)
    N, H, W, Cin = x_nhwc.shape
    Cout = w.shape[3]
    # columns ordered (dj, co) so one matmul covers both dj taps per di
    w_flat = jnp.transpose(w, (0, 2, 1, 3)).reshape(2, Cin, 2 * Cout)
    b_flat = jnp.concatenate([b, b]).reshape(1, 2 * Cout)
    out = pl.pallas_call(
        deconv2x2_kernel,
        out_shape=jax.ShapeDtypeStruct((N, H, 2, W, 2 * Cout), jnp.float32),
        grid=(N,),
        in_specs=[
            pl.BlockSpec((1, H, W, Cin), lambda n: (n, 0, 0, 0)),
            pl.BlockSpec((2, Cin, 2 * Cout), lambda n: (0, 0, 0)),
            pl.BlockSpec((1, 2 * Cout), lambda n: (0, 0)),
        ],
        out_specs=pl.BlockSpec((1, H, 2, W, 2 * Cout), lambda n: (n, 0, 0, 0, 0)),
        compiler_params=pltpu.CompilerParams(
            dimension_semantics=("parallel",), vmem_limit_bytes=_VMEM_LIMIT),
    )(x_nhwc, w_flat, b_flat)
    # (N, H, 2, W, 2, Cout) row-major == (N, 2H, 2W, Cout): free reshape, no transpose.
    return out.reshape(N, 2 * H, 2 * W, Cout)


# ----------------------------------------------------------------------------
# Kernel 2: fused Conv2d(3x3, pad=1) + BatchNorm(eval) + ReLU, with the channel
# concat fused in (multiple input refs, each with its own weight slice).
# Padding + dx-im2col are built inside the kernel in a VMEM scratch:
#   p[a, j, dx*Ci + c] = xpad[a, j + dx, c]      (xpad = 1-pixel zero halo)
# so the conv becomes 3 wide matmuls (one per dy, K = 3*Cin).
# ----------------------------------------------------------------------------
def _make_conv3x3_bn_relu_kernel(num_inputs):
    def kernel(*refs):
        x_refs = refs[:num_inputs]
        w_refs = refs[num_inputs:2 * num_inputs]
        shift_ref = refs[2 * num_inputs]
        o_ref = refs[2 * num_inputs + 1]
        patch_refs = refs[2 * num_inputs + 2:]

        H, W, Cout = o_ref.shape[1], o_ref.shape[2], o_ref.shape[3]
        acc = jnp.zeros((H * W, Cout), jnp.float32)
        for x_ref, w_ref, p_ref in zip(x_refs, w_refs, patch_refs):
            Ci = x_ref.shape[3]
            x = x_ref[0]                                            # (H, W, Ci)
            p_ref[...] = jnp.zeros_like(p_ref)                      # zero halo
            p_ref[1:H + 1, 1:W, 0:Ci] = x[:, 0:W - 1, :]            # dx = 0
            p_ref[1:H + 1, :, Ci:2 * Ci] = x                        # dx = 1
            p_ref[1:H + 1, 0:W - 1, 2 * Ci:3 * Ci] = x[:, 1:W, :]   # dx = 2
            for dy in range(3):
                patch = p_ref[dy:dy + H, :, :].reshape(H * W, 3 * Ci)
                acc = acc + jnp.dot(patch, w_ref[dy],
                                    preferred_element_type=jnp.float32)
        # BN scale is folded into w; shift_ref = b*scale + shift.
        o_ref[0] = jnp.maximum(acc + shift_ref[...], 0.0).reshape(H, W, Cout)
    return kernel


def conv3x3_bn_relu(inputs, w, b, scale, shift):
    """Conv2d(3x3, pad=1) + BatchNorm(eval) + ReLU.

    `inputs` is a list of NHWC tensors whose channels are (conceptually)
    concatenated; the concat is fused into the kernel instead of materialized.
    w: (3, 3, sum(Ci), Cout);  b/scale/shift: (Cout,)
    """
    N, H, W, _ = inputs[0].shape
    Cout = w.shape[3]
    w = w * scale[None, None, None, :]                 # fold BN scale into weights
    shift_p = (b * scale + shift).reshape(1, Cout)     # fold conv bias into BN shift

    w_splits, off = [], 0
    for x in inputs:
        Ci = x.shape[3]
        # rows ordered (dx, ci) to match the in-kernel im2col layout
        w_splits.append(w[:, :, off:off + Ci, :].reshape(3, 3 * Ci, Cout))
        off += Ci

    in_specs = (
        [pl.BlockSpec((1, H, W, x.shape[3]), lambda n: (n, 0, 0, 0)) for x in inputs]
        + [pl.BlockSpec((3, 3 * x.shape[3], Cout), lambda n: (0, 0, 0)) for x in inputs]
        + [pl.BlockSpec((1, Cout), lambda n: (0, 0))])
    scratch_shapes = [pltpu.VMEM((H + 2, W, 3 * x.shape[3]), jnp.float32) for x in inputs]

    return pl.pallas_call(
        _make_conv3x3_bn_relu_kernel(len(inputs)),
        out_shape=jax.ShapeDtypeStruct((N, H, W, Cout), jnp.float32),
        grid=(N,),
        in_specs=in_specs,
        out_specs=pl.BlockSpec((1, H, W, Cout), lambda n: (n, 0, 0, 0)),
        scratch_shapes=scratch_shapes,
        compiler_params=pltpu.CompilerParams(
            dimension_semantics=("parallel",), vmem_limit_bytes=_VMEM_LIMIT),
    )(*inputs, *w_splits, shift_p)


# ----------------------------------------------------------------------------
# Up.forward
# ----------------------------------------------------------------------------
def up_forward(params, xi_nchw, x_nchw):
    xi = jnp.transpose(xi_nchw, (0, 2, 3, 1)).astype(jnp.float32)   # NCHW -> NHWC
    x = jnp.transpose(x_nchw, (0, 2, 3, 1)).astype(jnp.float32)
    up = deconv2x2(x, params["deconv_w"], params["deconv_b"])
    # torch.cat([xi, up], dim=1) fused into conv1 (inputs in concat order).
    x = conv3x3_bn_relu([xi, up], params["conv1_w"], params["conv1_b"],
                        params["bn1_scale"], params["bn1_shift"])
    x = conv3x3_bn_relu([x], params["conv2_w"], params["conv2_b"],
                        params["bn2_scale"], params["bn2_shift"])
    return jnp.transpose(x, (0, 3, 1, 2))                            # back to NCHW


# Pure-JAX reference (independent check of the Pallas kernels).
def up_forward_ref(params, xi_nchw, x_nchw):
    xi = jnp.transpose(xi_nchw, (0, 2, 3, 1)).astype(jnp.float32)
    x = jnp.transpose(x_nchw, (0, 2, 3, 1)).astype(jnp.float32)
    N, H, W, _ = x.shape
    w = params["deconv_w"]
    Cout = w.shape[-1]
    y = jnp.einsum("nijc,decf->nidjef", x, w).reshape(N, 2 * H, 2 * W, Cout)
    y = y + params["deconv_b"]
    x = jnp.concatenate([xi, y], axis=-1)

    def cbr(x, w, b, scale, shift):
        y = jax.lax.conv_general_dilated(
            x, w, (1, 1), "SAME", dimension_numbers=("NHWC", "HWIO", "NHWC")) + b
        return jnp.maximum(y * scale + shift, 0.0)

    x = cbr(x, params["conv1_w"], params["conv1_b"],
            params["bn1_scale"], params["bn1_shift"])
    x = cbr(x, params["conv2_w"], params["conv2_b"],
            params["bn2_scale"], params["bn2_shift"])
    return jnp.transpose(x, (0, 3, 1, 2))


def init_params(key, in_channels, out_channels):
    ks = jax.random.split(key, 6)
    eps = 1e-5
    bn_scale = jnp.full((out_channels,), 1.0 / jnp.sqrt(1.0 + eps), jnp.float32)
    bn_shift = jnp.zeros((out_channels,), jnp.float32)
    return dict(
        # torch weight (Cin, Cout, 2, 2) stored here as (2, 2, Cin, Cout)
        deconv_w=0.1 * jax.random.normal(ks[0], (2, 2, in_channels, out_channels), jnp.float32),
        deconv_b=0.1 * jax.random.normal(ks[1], (out_channels,), jnp.float32),
        # torch weight (Cout, Cin, 3, 3) stored here as (3, 3, Cin, Cout)
        conv1_w=0.1 * jax.random.normal(ks[2], (3, 3, in_channels, out_channels), jnp.float32),
        conv1_b=0.1 * jax.random.normal(ks[3], (out_channels,), jnp.float32),
        bn1_scale=bn_scale, bn1_shift=bn_shift,
        conv2_w=0.1 * jax.random.normal(ks[4], (3, 3, out_channels, out_channels), jnp.float32),
        conv2_b=0.1 * jax.random.normal(ks[5], (out_channels,), jnp.float32),
        bn2_scale=bn_scale, bn2_shift=bn_shift,
    )


if __name__ == "__main__":
    key = jax.random.PRNGKey(0)
    in_channels, out_channels = 8, 4      # skip connection xi has in - out = 4 channels
    N, H, W = 2, 8, 8                     # x is the low-res feature map; deconv doubles H, W

    kx, kxi, kp = jax.random.split(key, 3)
    x = jax.random.normal(kx, (N, in_channels, H, W), jnp.float32)                   # NCHW
    xi = jax.random.normal(kxi, (N, in_channels - out_channels, 2 * H, 2 * W), jnp.float32)
    params = init_params(kp, in_channels, out_channels)

    out = jax.block_until_ready(up_forward(params, xi, x))
    ref = jax.block_until_ready(up_forward_ref(params, xi, x))

    assert out.shape == (N, out_channels, 2 * H, 2 * W), out.shape
    err = float(jnp.max(jnp.abs(out - ref)))
    assert jnp.allclose(out, ref, atol=2e-4, rtol=2e-4), err
    print("KERNEL_OK")
</pallas_src>

<mosaic_0001>
module attributes {stable_mosaic.version = 11 : i64} {
  func.func @deconv2x2_kernel(%arg0: i32, %arg1: memref<1x8x8x8xf32, #tpu.memory_space<vmem>>, %arg2: memref<2x8x8xf32, #tpu.memory_space<vmem>>, %arg3: memref<1x8xf32, #tpu.memory_space<vmem>>, %arg4: memref<1x8x2x8x8xf32, #tpu.memory_space<vmem>>) attributes {dimension_semantics = [#tpu.dimension_semantics<parallel>], iteration_bounds = array<i64: 2>, scalar_prefetch = 0 : i64, scratch_operands = 0 : i64, tpu.core_type = #tpu.core_type<tc>, window_params = [{transform_indices = @transform_0, window_bounds = array<i64: 1, 8, 8, 8>}, {pipeline_mode = #tpu.pipeline_mode<synchronous>, transform_indices = @transform_1, window_bounds = array<i64: 2, 8, 8>}, {pipeline_mode = #tpu.pipeline_mode<synchronous>, transform_indices = @transform_2, window_bounds = array<i64: 1, 8>}, {transform_indices = @transform_3, window_bounds = array<i64: 1, 8, 2, 8, 8>}]} {
    %c0 = arith.constant 0 : index
    %c0_0 = arith.constant 0 : index
    %c0_1 = arith.constant 0 : index
    %c0_2 = arith.constant 0 : index
    %0 = vector.load %arg1[%c0, %c0_0, %c0_1, %c0_2] : memref<1x8x8x8xf32, #tpu.memory_space<vmem>>, vector<1x8x8x8xf32>
    %1 = vector.shape_cast %0 : vector<1x8x8x8xf32> to vector<8x8x8xf32>
    %2 = vector.shape_cast %1 : vector<8x8x8xf32> to vector<64x8xf32>
    %c0_3 = arith.constant 0 : index
    %c0_4 = arith.constant 0 : index
    %3 = vector.load %arg3[%c0_3, %c0_4] : memref<1x8xf32, #tpu.memory_space<vmem>>, vector<1x8xf32>
    %c0_5 = arith.constant 0 : index
    %c0_6 = arith.constant 0 : index
    %c0_7 = arith.constant 0 : index
    %4 = vector.load %arg2[%c0_5, %c0_6, %c0_7] : memref<2x8x8xf32, #tpu.memory_space<vmem>>, vector<1x8x8xf32>
    %5 = vector.shape_cast %4 : vector<1x8x8xf32> to vector<8x8xf32>
    %cst = arith.constant dense<0.000000e+00> : vector<64x8xf32>
    %6 = tpu.matmul %2, %5, %cst {dimension_numbers = #tpu.dot_dimension_numbers<[1], [0], [0], [1], [0, 0, 1, 1], [], []>} : vector<64x8xf32>, vector<8x8xf32>, vector<64x8xf32> -> vector<64x8xf32>
    %7 = vector.broadcast %3 : vector<1x8xf32> to vector<64x8xf32>
    %8 = arith.addf %6, %7 : vector<64x8xf32>
    %9 = vector.shape_cast %8 : vector<64x8xf32> to vector<8x1x8x8xf32>
    %c0_8 = arith.constant 0 : index
    %c0_9 = arith.constant 0 : index
    %c0_10 = arith.constant 0 : index
    %c0_11 = arith.constant 0 : index
    %c0_12 = arith.constant 0 : index
    %10 = vector.load %arg4[%c0_8, %c0_9, %c0_10, %c0_11, %c0_12] : memref<1x8x2x8x8xf32, #tpu.memory_space<vmem>>, vector<1x8x1x8x8xf32>
    %11 = vector.shape_cast %10 : vector<1x8x1x8x8xf32> to vector<8x1x8x8xf32>
    %12 = vector.shape_cast %9 : vector<8x1x8x8xf32> to vector<1x8x1x8x8xf32>
    tpu.vector_store %arg4[%c0_8, %c0_9, %c0_10, %c0_11, %c0_12], %12 {strides = array<i32>} : memref<1x8x2x8x8xf32, #tpu.memory_space<vmem>>, vector<1x8x1x8x8xf32>,
    %c1 = arith.constant 1 : index
    %c0_13 = arith.constant 0 : index
    %c0_14 = arith.constant 0 : index
    %13 = vector.load %arg2[%c1, %c0_13, %c0_14] : memref<2x8x8xf32, #tpu.memory_space<vmem>>, vector<1x8x8xf32>
    %14 = vector.shape_cast %13 : vector<1x8x8xf32> to vector<8x8xf32>
    %cst_15 = arith.constant dense<0.000000e+00> : vector<64x8xf32>
    %15 = tpu.matmul %2, %14, %cst_15 {dimension_numbers = #tpu.dot_dimension_numbers<[1], [0], [0], [1], [0, 0, 1, 1], [], []>} : vector<64x8xf32>, vector<8x8xf32>, vector<64x8xf32> -> vector<64x8xf32>
    %16 = vector.broadcast %3 : vector<1x8xf32> to vector<64x8xf32>
    %17 = arith.addf %15, %16 : vector<64x8xf32>
    %18 = vector.shape_cast %17 : vector<64x8xf32> to vector<8x1x8x8xf32>
    %c0_16 = arith.constant 0 : index
    %c0_17 = arith.constant 0 : index
    %c1_18 = arith.constant 1 : index
    %c0_19 = arith.constant 0 : index
    %c0_20 = arith.constant 0 : index
    %19 = vector.load %arg4[%c0_16, %c0_17, %c1_18, %c0_19, %c0_20] : memref<1x8x2x8x8xf32, #tpu.memory_space<vmem>>, vector<1x8x1x8x8xf32>
    %20 = vector.shape_cast %19 : vector<1x8x1x8x8xf32> to vector<8x1x8x8xf32>
    %21 = vector.shape_cast %18 : vector<8x1x8x8xf32> to vector<1x8x1x8x8xf32>
    tpu.vector_store %arg4[%c0_16, %c0_17, %c1_18, %c0_19, %c0_20], %21 {strides = array<i32>} : memref<1x8x2x8x8xf32, #tpu.memory_space<vmem>>, vector<1x8x1x8x8xf32>,
    return
  }
  func.func @transform_0(%arg0: i32) -> (i32, i32, i32, i32) {
    %c0_i32 = arith.constant 0 : i32
    %c0_i32_0 = arith.constant 0 : i32
    %c0_i32_1 = arith.constant 0 : i32
    %c0_i32_2 = arith.constant 0 : i32
    return %arg0, %c0_i32, %c0_i32_0, %c0_i32_1 : i32, i32, i32, i32
  }
  func.func @transform_1(%arg0: i32) -> (i32, i32, i32) {
    %c0_i32 = arith.constant 0 : i32
    %c0_i32_0 = arith.constant 0 : i32
    %c0_i32_1 = arith.constant 0 : i32
    %c0_i32_2 = arith.constant 0 : i32
    return %c0_i32, %c0_i32_0, %c0_i32_1 : i32, i32, i32
  }
  func.func @transform_2(%arg0: i32) -> (i32, i32) {
    %c0_i32 = arith.constant 0 : i32
    %c0_i32_0 = arith.constant 0 : i32
    %c0_i32_1 = arith.constant 0 : i32
    return %c0_i32, %c0_i32_0 : i32, i32
  }
  func.func @transform_3(%arg0: i32) -> (i32, i32, i32, i32, i32) {
    %c0_i32 = arith.constant 0 : i32
    %c0_i32_0 = arith.constant 0 : i32
    %c0_i32_1 = arith.constant 0 : i32
    %c0_i32_2 = arith.constant 0 : i32
    %c0_i32_3 = arith.constant 0 : i32
    return %arg0, %c0_i32, %c0_i32_0, %c0_i32_1, %c0_i32_2 : i32, i32, i32, i32, i32
  }
}

</mosaic_0001>

<llo_original>
// kernel: tpu_custom_call.1
$region0: #{tpu_custom_call.1}
  #allocation0 [shape = 'u32[]', space=smem, size = 0x4, offset = 0x4, fixed_abs, tag = 'smem constant byte address 0x4 - core index']
  #allocation1 [shape = 'u32[144,128]{1,0:T(1,128)}', space=vmem, size = 0x12000, scoped, tag = 'internal scratch']
  %s0 = inlined_call_operand.hbm [shape: f32[2,8,8,8], index: 0, kind: input, shape index: {}]
  %s1 = inlined_call_operand.hbm [shape: f32[2,8,8], index: 1, kind: input, shape index: {}]
  %s2 = inlined_call_operand.vmem [shape: f32[1,8], index: 2, kind: input, shape index: {}]
  %s3 = inlined_call_operand.hbm [shape: f32[2,8,2,8,8], index: 3, kind: output, shape index: {}]
  %s4 = sld [smem:[#allocation0]]
  $region53: #{tpu_custom_call.1} parent=0
    _
  %s6 = ssub.s32 1, %s4
  %s7 = scalar_select 0, %s6, %s4
  $region1: #{tpu_custom_call.1} parent=0
    #allocation2 [shape = 'u8[65536]{0}', space=vmem, size = 0x10000, scoped, tag = 'input window, operand 0']
    #allocation3 [shape = 's32[2]{0}', space=sflag, size = 0x8, scoped, tag = 'scoped memory for tpu_custom_call.1']
    #allocation4 [shape = 's32[2]{0}', space=sflag, size = 0x8, scoped, tag = 'scoped memory for tpu_custom_call.1']
    #allocation5 [shape = 'u8[8192]{0}', space=vmem, size = 0x2000, scoped, tag = 'input window, operand 1, single buffered']
    #allocation6 [shape = 's32[1]{0}', space=sflag, size = 0x4, scoped, tag = 'scoped memory for tpu_custom_call.1']
    #allocation7 [shape = 'u8[131072]{0}', space=vmem, size = 0x20000, scoped, tag = 'output window, operand 0']
    %8 = vsyncpa [#allocation3], 0
    %s9 = scalar_lea.sflag [#allocation3], 1
    %10 = vsyncpa %s9, 0
    %11 = vsyncpa [#allocation6], 0
    %12 = vsyncpa [#allocation4], 0
    %s13 = scalar_lea.sflag [#allocation4], 1
    %14 = vsyncpa %s13, 0
    loop: start=0, step=1, limit=4
    $region2: #{tpu_custom_call.1} parent=1 // loop_pre_header
      _
    $region3: #{tpu_custom_call.1} parent=1 // loop_header
      %s16 = sphi 0, %s20
      %p17 = scmp.ge.s32.totalorder %s16, 4
      %s26 = sphi 0, %s28
      %s29 = sphi 0, %s26
      %s30 = sphi 0, %s29
      %s46 = sphi 0, %s30
      %s50 = sphi 0, %s50
      %s52 = sphi 0, %s50
      %s53 = sphi 0, %s52
      %s67 = sphi 0, %s53
      %s71 = sphi 0, %s71
      %s73 = sphi 0, %s71
      %s74 = sphi 0, %s73
      %s88 = sphi 0, %s74
      %s94 = sphi 0, %s96
      %s97 = sphi 0, %s94
      %s98 = sphi 0, %s97
      %s114 = sphi 0, %s98
    $region4: #{tpu_custom_call.1} parent=1 // loop_header_branch
      %19 = sbr.rel (%p17) target = $region8
    $region5: #{tpu_custom_call.1} parent=1 // loop_body
      %s21 = ssub.s32 %s16, 1
      %s22 = ssub.s32 %s16, 2
      %s23 = sadd.s32 %s16, 1
      %s24 = ssub.s32 %s16, %s23
      %p25 = scmp.eq.s32.totalorder %s24, 0
      %s27 = sadd.s32 %s26, 1
      %s28 = scalar_select %p25, %s26, %s27
      %p31 = pneg %p25
      %p32 = scmp.eq.s32.totalorder %s16, 1
      %p33 = por %p31, %p32
      %p34 = scmp.ne.s32.totalorder %s26, %s29
      %p35 = scmp.eq.s32.totalorder %s16, 0
      %p36 = por %p34, %p35
      %p37 = scmp.ne.s32.totalorder %s26, %s29
      %p38 = scmp.eq.s32.totalorder %s21, 1
      %p39 = por %p37, %p38
      %p40 = scmp.ne.s32.totalorder %s29, %s30
      %p41 = scmp.eq.s32.totalorder %s21, 0
      %p42 = por %p40, %p41
      %p43 = scmp.ne.s32.totalorder %s29, %s30
      %p44 = scmp.eq.s32.totalorder %s22, 1
      %p45 = por %p43, %p44
      %p47 = scmp.ne.s32.totalorder %s30, %s46
      %p48 = scmp.eq.s32.totalorder %s22, 0
      %p49 = por %p47, %p48
      %s51 = sadd.s32 %s50, 1
      %p54 = scmp.eq.s32.totalorder %s16, 1
      %p55 = scmp.ne.s32.totalorder %s50, %s52
      %p56 = scmp.eq.s32.totalorder %s16, 0
      %p57 = por %p55, %p56
      %p58 = scmp.ne.s32.totalorder %s50, %s52
      %p59 = scmp.eq.s32.totalorder %s21, 1
      %p60 = por %p58, %p59
      %p61 = scmp.ne.s32.totalorder %s52, %s53
      %p62 = scmp.eq.s32.totalorder %s21, 0
      %p63 = por %p61, %p62
      %p64 = scmp.ne.s32.totalorder %s52, %s53
      %p65 = scmp.eq.s32.totalorder %s22, 1
      %p66 = por %p64, %p65
      %p68 = scmp.ne.s32.totalorder %s53, %s67
      %p69 = scmp.eq.s32.totalorder %s22, 0
      %p70 = por %p68, %p69
      %s72 = sadd.s32 %s71, 1
      %p75 = scmp.eq.s32.totalorder %s16, 1
      %p76 = scmp.ne.s32.totalorder %s71, %s73
      %p77 = scmp.eq.s32.totalorder %s16, 0
      %p78 = por %p76, %p77
      %p79 = scmp.ne.s32.totalorder %s71, %s73
      %p80 = scmp.eq.s32.totalorder %s21, 1
      %p81 = por %p79, %p80
      %p82 = scmp.ne.s32.totalorder %s73, %s74
      %p83 = scmp.eq.s32.totalorder %s21, 0
      %p84 = por %p82, %p83
      %p85 = scmp.ne.s32.totalorder %s73, %s74
      %p86 = scmp.eq.s32.totalorder %s22, 1
      %p87 = por %p85, %p86
      %p89 = scmp.ne.s32.totalorder %s74, %s88
      %p90 = scmp.eq.s32.totalorder %s22, 0
      %p91 = por %p89, %p90
      %s92 = ssub.s32 %s16, %s23
      %p93 = scmp.eq.s32.totalorder %s92, 0
      %s95 = sadd.s32 %s94, 1
      %s96 = scalar_select %p93, %s94, %s95
      %p99 = pneg %p93
      %p100 = scmp.eq.s32.totalorder %s16, 1
      %p101 = por %p99, %p100
      %p102 = scmp.ne.s32.totalorder %s94, %s97
      %p103 = scmp.eq.s32.totalorder %s16, 0
      %p104 = por %p102, %p103
      %p105 = scmp.ne.s32.totalorder %s94, %s97
      %p106 = scmp.eq.s32.totalorder %s21, 1
      %p107 = por %p105, %p106
      %p108 = scmp.ne.s32.totalorder %s97, %s98
      %p109 = scmp.eq.s32.totalorder %s21, 0
      %p110 = por %p108, %p109
      %p111 = scmp.ne.s32.totalorder %s97, %s98
      %p112 = scmp.eq.s32.totalorder %s22, 1
      %p113 = por %p111, %p112
      %p115 = scmp.ne.s32.totalorder %s98, %s114
      %p116 = scmp.eq.s32.totalorder %s22, 0
      %p117 = por %p115, %p116
      %p118 = scmp.le.s32.totalorder 1, %s16
      %p119 = scmp.lt.s32.totalorder %s16, 3
      %p120 = pnand %p118, %p119
      %p121 = pneg %p120
      // Predicated region
      $region9: #{tpu_custom_call.1} parent=5 // pred_check
        _
      $region10: #{tpu_custom_call.1} parent=5 // pred_check_branch
        %123 = sbr.rel (%p120) target = $region12
      $region11: #{tpu_custom_call.1} parent=5 // pred_region
        %s124 = ssub.s32 %s16, 1
        // Predicated region
        $region13: #{tpu_custom_call.1} parent=11 // pred_check
          %p125 = pneg %p63
        $region14: #{tpu_custom_call.1} parent=11 // pred_check_branch
          %127 = sbr.rel (%p125) target = $region16
        $region15: #{tpu_custom_call.1} parent=11 // pred_region
          %s129 = ssub.s32 256, 256
          %130 = vsyncadd [#allocation6], %s129
          %s131 = sshll.u32 [#allocation5], 4
          %s132 = int_to_ptr.vmem [resolvable:$true] %s131
          %137 = dma.hbm_to_vmem [thread:$0]  %s1, 256, %s132, [#allocation6], 128, 128, 8
        $region16: #{tpu_custom_call.1} parent=11 // pred_fallthru
          _
        // Predicated region
        $region17: #{tpu_custom_call.1} parent=11 // pred_check
          %p138 = pneg %p84
        $region18: #{tpu_custom_call.1} parent=11 // pred_check_branch
          %140 = sbr.rel (%p138) target = $region20
        $region19: #{tpu_custom_call.1} parent=11 // pred_region
          _
        $region20: #{tpu_custom_call.1} parent=11 // pred_fallthru
          _
      $region12: #{tpu_custom_call.1} parent=5 // pred_fallthru
        _
      %p141 = scmp.lt.s32.totalorder %s16, 2
      // Predicated region
      $region21: #{tpu_custom_call.1} parent=5 // pred_check
        %p142 = pneg %p141
      $region22: #{tpu_custom_call.1} parent=5 // pred_check_branch
        %144 = sbr.rel (%p142) target = $region24
      $region23: #{tpu_custom_call.1} parent=5 // pred_region
        // Predicated region
        $region25: #{tpu_custom_call.1} parent=23 // pred_check
          %p145 = pneg %p36
        $region26: #{tpu_custom_call.1} parent=23 // pred_check_branch
          %147 = sbr.rel (%p145) target = $region28
        $region27: #{tpu_custom_call.1} parent=23 // pred_region
          %s148 = sand.u32 %s26, 1
          %s149 = scalar_lea.sflag [#allocation3], %s148
          %s150 = sand.u32 %s26, 1
          %s151 = smul.addr %s150, 64
          %s152 = scalar_lea.vmem [#allocation2], %s151
          %s154 = ssub.s32 1024, 1024
          %155 = vsyncadd %s149, %s154
          %s156 = smul.addr %s16, 8
          %s157 = smul.addr %s156, 128
          %s158 = scalar_lea.hbm %s0, %s157
          %s159 = sshll.u32 %s152, 4
          %s160 = int_to_ptr.vmem [resolvable:$true] %s159
          %165 = dma.hbm_to_vmem [thread:$0]  %s158, 1024, %s160, %s149, 128, 128, 8
        $region28: #{tpu_custom_call.1} parent=23 // pred_fallthru
          _
      $region24: #{tpu_custom_call.1} parent=5 // pred_fallthru
        _
      %p166 = scmp.le.s32.totalorder 1, %s16
      %p167 = scmp.lt.s32.totalorder %s16, 3
      %p168 = pnand %p166, %p167
      %p169 = pneg %p168
      // Predicated region
      $region29: #{tpu_custom_call.1} parent=5 // pred_check
        _
      $region30: #{tpu_custom_call.1} parent=5 // pred_check_branch
        %171 = sbr.rel (%p168) target = $region32
      $region31: #{tpu_custom_call.1} parent=5 // pred_region
        %s172 = ssub.s32 %s16, 1
        %s173 = sand.u32 %s29, 1
        %s174 = scalar_lea.sflag [#allocation3], %s173
        %s175 = sand.u32 %s29, 1
        %s176 = smul.addr %s175, 64
        %s177 = scalar_lea.vmem [#allocation2], %s176
        // Predicated region
        $region33: #{tpu_custom_call.1} parent=31 // pred_check
          %p178 = pneg %p42
        $region34: #{tpu_custom_call.1} parent=31 // pred_check_branch
          %180 = sbr.rel (%p178) target = $region36
        $region35: #{tpu_custom_call.1} parent=31 // pred_region
          %181 = dma.done %s174, 1024
        $region36: #{tpu_custom_call.1} parent=31 // pred_fallthru
          _
        // Predicated region
        $region37: #{tpu_custom_call.1} parent=31 // pred_check
          %p182 = pneg %p63
        $region38: #{tpu_custom_call.1} parent=31 // pred_check_branch
          %184 = sbr.rel (%p182) target = $region40
        $region39: #{tpu_custom_call.1} parent=31 // pred_region
          %185 = dma.done [#allocation6], 256
        $region40: #{tpu_custom_call.1} parent=31 // pred_fallthru
          _
        %s186 = sand.u32 %s29, 1
        %s187 = scalar_lea.sflag [#allocation3], %s186
        %s188 = sand.u32 %s29, 1
        %s189 = smul.addr %s188, 64
        %s190 = scalar_lea.vmem [#allocation2], %s189
        %p191 = pneg %p42
        %p192 = pneg %p39
        %p193 = pneg %p63
        %p194 = pneg %p60
        %p195 = pneg %p84
        %p196 = pneg %p81
        %p197 = pneg %p110
        %p198 = pneg %p107
        %s199 = sand.u32 %s97, 1
        %s200 = scalar_lea.sflag [#allocation4], %s199
        %s201 = sand.u32 %s97, 1
        %s202 = smul.addr %s201, 128
        %s203 = scalar_lea.vmem [#allocation7], %s202
        %v204 = vld [vmem:[%s177] sm:$0xff]
        %v205 = vld [vmem:[%s177 + $0x8] sm:$0xff]
        %v206 = vld [vmem:[%s177 + $0x10] sm:$0xff]
        %v207 = vld [vmem:[%s177 + $0x18] sm:$0xff]
        %v208 = vld [vmem:[%s177 + $0x20] sm:$0xff]
        %v209 = vld [vmem:[%s177 + $0x28] sm:$0xff]
        %v210 = vld [vmem:[%s177 + $0x30] sm:$0xff]
        %v211 = vld [vmem:[%s177 + $0x38] sm:$0xff]
        %v212 = vld [vmem:[%s2] sm:$0x1]
        %v213 = vld [vmem:[#allocation5] sm:$0xff]
        %v215 = vlaneseq
        %v216 = vshrl.u32 %v215, 7
        %v217 = vsub.s32 0, %v216
        %v218 = vrot.slane %v212, %v217
        %vm220 = vcmask 64512
        %v222 = vsel %vm220, %v204, 0
        %v225 = vsel %vm220, %v205, 0
        %v228 = vsel %vm220, %v206, 0
        %v231 = vsel %vm220, %v207, 0
        %v234 = vsel %vm220, %v208, 0
        %v237 = vsel %vm220, %v209, 0
        %v240 = vsel %vm220, %v210, 0
        %v243 = vsel %vm220, %v211, 0
        %245 = vmatprep.subr.mxu0 0.0
        %246 = vmatpush1.msra.mxu0 %v213
        %247 = vmatprep.subr.mxu0 0.0
        %248 = vmatpush1.msra.mxu0 0.0
        %249 = vmatprep.subr.mxu0 0.0
        %250 = vmatpush1.msra.mxu0 0.0
        %251 = vmatprep.subr.mxu0 0.0
        %252 = vmatpush1.msra.mxu0 0.0
        %253 = vmatprep.subr.mxu0 0.0
        %254 = vmatpush1.msra.mxu0 0.0
        %255 = vmatprep.subr.mxu0 0.0
        %256 = vmatpush1.msra.mxu0 0.0
        %257 = vmatprep.subr.mxu0 0.0
        %258 = vmatpush1.msra.mxu0 0.0
        %259 = vmatprep.subr.mxu0 0.0
        %260 = vmatpush1.msra.mxu0 0.0
        %261 = vmatprep.subr.mxu0 0.0
        %262 = vmatpush1.msra.mxu0 0.0
        %263 = vmatprep.subr.mxu0 0.0
        %264 = vmatpush1.msra.mxu0 0.0
        %265 = vmatprep.subr.mxu0 0.0
        %266 = vmatpush1.msra.mxu0 0.0
        %267 = vmatprep.subr.mxu0 0.0
        %268 = vmatpush1.msra.mxu0 0.0
        %269 = vmatprep.subr.mxu0 0.0
        %270 = vmatpush1.msra.mxu0 0.0
        %271 = vmatprep.subr.mxu0 0.0
        %272 = vmatpush1.msra.mxu0 0.0
        %273 = vmatprep.subr.mxu0 0.0
        %274 = vmatpush1.msra.mxu0 0.0
        %275 = vmatprep.subr.mxu0 0.0
        %276 = vmatpush1.msra.mxu0 0.0
        %277 = vmatprep.subr.mxu0 0.0
        %278 = vmatpush1.msra.mxu0 0.0
        %279 = vmatprep.subr.mxu0 0.0
        %280 = vmatpush1.msra.mxu0 0.0
        %281 = vmatprep.subr.mxu0 0.0
        %282 = vmatpush1.msra.mxu0 0.0
        %283 = vmatprep.subr.mxu0 0.0
        %284 = vmatpush1.msra.mxu0 0.0
        %285 = vmatprep.subr.mxu0 0.0
        %286 = vmatpush1.msra.mxu0 0.0
        %287 = vmatprep.subr.mxu0 0.0
        %288 = vmatpush1.msra.mxu0 0.0
        %289 = vmatprep.subr.mxu0 0.0
        %290 = vmatpush1.msra.mxu0 0.0
        %291 = vmatprep.subr.mxu0 0.0
        %292 = vmatpush1.msra.mxu0 0.0
        %293 = vmatprep.subr.mxu0 0.0
        %294 = vmatpush1.msra.mxu0 0.0
        %295 = vmatprep.subr.mxu0 0.0
        %296 = vmatpush1.msra.mxu0 0.0
        %297 = vmatprep.subr.mxu0 0.0
        %298 = vmatpush1.msra.mxu0 0.0
        %299 = vmatprep.subr.mxu0 0.0
        %300 = vmatpush1.msra.mxu0 0.0
        %301 = vmatprep.subr.mxu0 0.0
        %302 = vmatpush1.msra.mxu0 0.0
        %303 = vmatprep.subr.mxu0 0.0
        %304 = vmatpush1.msra.mxu0 0.0
        %305 = vmatprep.subr.mxu0 0.0
        %306 = vmatpush1.msra.mxu0 0.0
        %307 = vmatprep.subr.mxu0 0.0
        %308 = vmatpush1.msra.mxu0 0.0
        %309 = vmatprep.mubr.f32.mxu0 0.0
        %310 = vmatmul.mubr.f32.gmra.mrb[0].mxu0 %v222
        %v311 = vpop.f32.mrb[0].mxu0
        %v312 = vadd.f32 %v218, %v311
        %v313 = vpop.f32.mrb[0].mxu0
        %314 = vmatprep.mubr.f32.mxu0 0.0
        %315 = vmatmul.mubr.f32.gmra.mrb[0].mxu0 %v225
        %v316 = vpop.f32.mrb[0].mxu0
        %v317 = vadd.f32 %v218, %v316
        %v318 = vpop.f32.mrb[0].mxu0
        %319 = vmatprep.mubr.f32.mxu0 0.0
        %320 = vmatmul.mubr.f32.gmra.mrb[0].mxu0 %v228
        %v321 = vpop.f32.mrb[0].mxu0
        %v322 = vadd.f32 %v218, %v321
        %v323 = vpop.f32.mrb[0].mxu0
        %324 = vmatprep.mubr.f32.mxu0 0.0
        %325 = vmatmul.mubr.f32.gmra.mrb[0].mxu0 %v231
        %v326 = vpop.f32.mrb[0].mxu0
        %v327 = vadd.f32 %v218, %v326
        %v328 = vpop.f32.mrb[0].mxu0
        %329 = vmatprep.mubr.f32.mxu0 0.0
        %330 = vmatmul.mubr.f32.gmra.mrb[0].mxu0 %v234
        %v331 = vpop.f32.mrb[0].mxu0
        %v332 = vadd.f32 %v218, %v331
        %v333 = vpop.f32.mrb[0].mxu0
        %334 = vmatprep.mubr.f32.mxu0 0.0
        %335 = vmatmul.mubr.f32.gmra.mrb[0].mxu0 %v237
        %v336 = vpop.f32.mrb[0].mxu0
        %v337 = vadd.f32 %v218, %v336
        %v338 = vpop.f32.mrb[0].mxu0
        %339 = vmatprep.mubr.f32.mxu0 0.0
        %340 = vmatmul.mubr.f32.gmra.mrb[0].mxu0 %v240
        %v341 = vpop.f32.mrb[0].mxu0
        %v342 = vadd.f32 %v218, %v341
        %v343 = vpop.f32.mrb[0].mxu0
        %344 = vmatprep.mubr.f32.mxu0 0.0
        %345 = vmatmul.mubr.f32.gmra.mrb[0].mxu0 %v243
        %v346 = vpop.f32.mrb[0].mxu0
        %v347 = vadd.f32 %v218, %v346
        %v348 = vpop.f32.mrb[0].mxu0
        %349 = vdwg.mxu0
        %350 = vst.msk [vmem:[%s203] sm:$0xff] %vm220, %v312
        %351 = vst.msk [vmem:[%s203 + $0x10] sm:$0xff] %vm220, %v317
        %352 = vst.msk [vmem:[%s203 + $0x20] sm:$0xff] %vm220, %v322
        %353 = vst.msk [vmem:[%s203 + $0x30] sm:$0xff] %vm220, %v327
        %354 = vst.msk [vmem:[%s203 + $0x40] sm:$0xff] %vm220, %v332
        %355 = vst.msk [vmem:[%s203 + $0x50] sm:$0xff] %vm220, %v337
        %356 = vst.msk [vmem:[%s203 + $0x60] sm:$0xff] %vm220, %v342
        %357 = vst.msk [vmem:[%s203 + $0x70] sm:$0xff] %vm220, %v347
        %s358 = scalar_lea.vmem [#allocation5], 8
        %v359 = vld [vmem:[%s358] sm:$0xff]
        %360 = vmatprep.subr.mxu0 0.0
        %361 = vmatpush1.msra.mxu0 %v359
        %362 = vmatprep.subr.mxu0 0.0
        %363 = vmatpush1.msra.mxu0 0.0
        %364 = vmatprep.subr.mxu0 0.0
        %365 = vmatpush1.msra.mxu0 0.0
        %366 = vmatprep.subr.mxu0 0.0
        %367 = vmatpush1.msra.mxu0 0.0
        %368 = vmatprep.subr.mxu0 0.0
        %369 = vmatpush1.msra.mxu0 0.0
        %370 = vmatprep.subr.mxu0 0.0
        %371 = vmatpush1.msra.mxu0 0.0
        %372 = vmatprep.subr.mxu0 0.0
        %373 = vmatpush1.msra.mxu0 0.0
        %374 = vmatprep.subr.mxu0 0.0
        %375 = vmatpush1.msra.mxu0 0.0
        %376 = vmatprep.subr.mxu0 0.0
        %377 = vmatpush1.msra.mxu0 0.0
        %378 = vmatprep.subr.mxu0 0.0
        %379 = vmatpush1.msra.mxu0 0.0
        %380 = vmatprep.subr.mxu0 0.0
        %381 = vmatpush1.msra.mxu0 0.0
        %382 = vmatprep.subr.mxu0 0.0
        %383 = vmatpush1.msra.mxu0 0.0
        %384 = vmatprep.subr.mxu0 0.0
        %385 = vmatpush1.msra.mxu0 0.0
        %386 = vmatprep.subr.mxu0 0.0
        %387 = vmatpush1.msra.mxu0 0.0
        %388 = vmatprep.subr.mxu0 0.0
        %389 = vmatpush1.msra.mxu0 0.0
        %390 = vmatprep.subr.mxu0 0.0
        %391 = vmatpush1.msra.mxu0 0.0
        %392 = vmatprep.subr.mxu0 0.0
        %393 = vmatpush1.msra.mxu0 0.0
        %394 = vmatprep.subr.mxu0 0.0
        %395 = vmatpush1.msra.mxu0 0.0
        %396 = vmatprep.subr.mxu0 0.0
        %397 = vmatpush1.msra.mxu0 0.0
        %398 = vmatprep.subr.mxu0 0.0
        %399 = vmatpush1.msra.mxu0 0.0
        %400 = vmatprep.subr.mxu0 0.0
        %401 = vmatpush1.msra.mxu0 0.0
        %402 = vmatprep.subr.mxu0 0.0
        %403 = vmatpush1.msra.mxu0 0.0
        %404 = vmatprep.subr.mxu0 0.0
        %405 = vmatpush1.msra.mxu0 0.0
        %406 = vmatprep.subr.mxu0 0.0
        %407 = vmatpush1.msra.mxu0 0.0
        %408 = vmatprep.subr.mxu0 0.0
        %409 = vmatpush1.msra.mxu0 0.0
        %410 = vmatprep.subr.mxu0 0.0
        %411 = vmatpush1.msra.mxu0 0.0
        %412 = vmatprep.subr.mxu0 0.0
        %413 = vmatpush1.msra.mxu0 0.0
        %414 = vmatprep.subr.mxu0 0.0
        %415 = vmatpush1.msra.mxu0 0.0
        %416 = vmatprep.subr.mxu0 0.0
        %417 = vmatpush1.msra.mxu0 0.0
        %418 = vmatprep.subr.mxu0 0.0
        %419 = vmatpush1.msra.mxu0 0.0
        %420 = vmatprep.subr.mxu0 0.0
        %421 = vmatpush1.msra.mxu0 0.0
        %422 = vmatprep.subr.mxu0 0.0
        %423 = vmatpush1.msra.mxu0 0.0
        %424 = vmatprep.mubr.f32.mxu0 0.0
        %425 = vmatmul.mubr.f32.gmra.mrb[0].mxu0 %v222
        %v426 = vpop.f32.mrb[0].mxu0
        %v427 = vadd.f32 %v218, %v426
        %v428 = vpop.f32.mrb[0].mxu0
        %429 = vmatprep.mubr.f32.mxu0 0.0
        %430 = vmatmul.mubr.f32.gmra.mrb[0].mxu0 %v225
        %v431 = vpop.f32.mrb[0].mxu0
        %v432 = vadd.f32 %v218, %v431
        %v433 = vpop.f32.mrb[0].mxu0
        %434 = vmatprep.mubr.f32.mxu0 0.0
        %435 = vmatmul.mubr.f32.gmra.mrb[0].mxu0 %v228
        %v436 = vpop.f32.mrb[0].mxu0
        %v437 = vadd.f32 %v218, %v436
        %v438 = vpop.f32.mrb[0].mxu0
        %439 = vmatprep.mubr.f32.mxu0 0.0
        %440 = vmatmul.mubr.f32.gmra.mrb[0].mxu0 %v231
        %v441 = vpop.f32.mrb[0].mxu0
        %v442 = vadd.f32 %v218, %v441
        %v443 = vpop.f32.mrb[0].mxu0
        %444 = vmatprep.mubr.f32.mxu0 0.0
        %445 = vmatmul.mubr.f32.gmra.mrb[0].mxu0 %v234
        %v446 = vpop.f32.mrb[0].mxu0
        %v447 = vadd.f32 %v218, %v446
        %v448 = vpop.f32.mrb[0].mxu0
        %449 = vmatprep.mubr.f32.mxu0 0.0
        %450 = vmatmul.mubr.f32.gmra.mrb[0].mxu0 %v237
        %v451 = vpop.f32.mrb[0].mxu0
        %v452 = vadd.f32 %v218, %v451
        %v453 = vpop.f32.mrb[0].mxu0
        %454 = vmatprep.mubr.f32.mxu0 0.0
        %455 = vmatmul.mubr.f32.gmra.mrb[0].mxu0 %v240
        %v456 = vpop.f32.mrb[0].mxu0
        %v457 = vadd.f32 %v218, %v456
        %v458 = vpop.f32.mrb[0].mxu0
        %459 = vmatprep.mubr.f32.mxu0 0.0
        %460 = vmatmul.mubr.f32.gmra.mrb[0].mxu0 %v243
        %v461 = vpop.f32.mrb[0].mxu0
        %v462 = vadd.f32 %v218, %v461
        %v463 = vpop.f32.mrb[0].mxu0
        %464 = vdwg.mxu0
        %s465 = scalar_lea.vmem %s203, 8 [#allocation7]
        %466 = vst.msk [vmem:[%s465] sm:$0xff] %vm220, %v427
        %467 = vst.msk [vmem:[%s465 + $0x10] sm:$0xff] %vm220, %v432
        %468 = vst.msk [vmem:[%s465 + $0x20] sm:$0xff] %vm220, %v437
        %469 = vst.msk [vmem:[%s465 + $0x30] sm:$0xff] %vm220, %v442
        %470 = vst.msk [vmem:[%s465 + $0x40] sm:$0xff] %vm220, %v447
        %471 = vst.msk [vmem:[%s465 + $0x50] sm:$0xff] %vm220, %v452
        %472 = vst.msk [vmem:[%s465 + $0x60] sm:$0xff] %vm220, %v457
        %473 = vst.msk [vmem:[%s465 + $0x70] sm:$0xff] %vm220, %v462
        %s474 = sand.u32 %s97, 1
        %s475 = scalar_lea.sflag [#allocation4], %s474
        %s476 = sand.u32 %s97, 1
        %s477 = smul.addr %s476, 128
        %s478 = scalar_lea.vmem [#allocation7], %s477
        // Predicated region
        $region41: #{tpu_custom_call.1} parent=31 // pred_check
          %p479 = pneg %p107
        $region42: #{tpu_custom_call.1} parent=31 // pred_check_branch
          %481 = sbr.rel (%p479) target = $region44
        $region43: #{tpu_custom_call.1} parent=31 // pred_region
          %s483 = ssub.s32 2048, 2048
          %484 = vsyncadd %s475, %s483
          %s485 = smul.addr %s21, 16
          %s486 = smul.addr %s485, 128
          %s487 = scalar_lea.hbm %s3, %s486
          %s488 = sshll.u32 %s478, 4
          %s489 = int_to_ptr.vmem [resolvable:$true] %s488
          %494 = dma.vmem_to_hbm [thread:$0]  %s489, 2048, %s487, %s475, 128, 128, 8
        $region44: #{tpu_custom_call.1} parent=31 // pred_fallthru
          _
      $region32: #{tpu_custom_call.1} parent=5 // pred_fallthru
        _
      %p495 = scmp.le.s32.totalorder 2, %s16
      // Predicated region
      $region45: #{tpu_custom_call.1} parent=5 // pred_check
        %p496 = pneg %p495
      $region46: #{tpu_custom_call.1} parent=5 // pred_check_branch
        %498 = sbr.rel (%p496) target = $region48
      $region47: #{tpu_custom_call.1} parent=5 // pred_region
        %s499 = ssub.s32 %s16, 2
        // Predicated region
        $region49: #{tpu_custom_call.1} parent=47 // pred_check
          %p500 = pneg %p113
        $region50: #{tpu_custom_call.1} parent=47 // pred_check_branch
          %502 = sbr.rel (%p500) target = $region52
        $region51: #{tpu_custom_call.1} parent=47 // pred_region
          %s503 = sand.u32 %s98, 1
          %s504 = scalar_lea.sflag [#allocation4], %s503
          %s505 = sand.u32 %s98, 1
          %s506 = smul.addr %s505, 128
          %s507 = scalar_lea.vmem [#allocation7], %s506
          %508 = dma.done %s504, 2048
        $region52: #{tpu_custom_call.1} parent=47 // pred_fallthru
          _
      $region48: #{tpu_custom_call.1} parent=5 // pred_fallthru
        _
    $region6: #{tpu_custom_call.1} parent=1 // loop_footer
      %s20 = sadd.s32 1, %s16
    $region7: #{tpu_custom_call.1} parent=1 // loop_footer_branch
      %15 = sbr.rel target = $region3
    $region8: #{tpu_custom_call.1} parent=1 // loop_exit
      _
    %509 = vsyncpa [#allocation3], 1
    %s510 = scalar_lea.sflag [#allocation3], 1
    %511 = vsyncpa %s510, 1
    %512 = vsyncpa [#allocation6], 1
    %513 = vsyncpa [#allocation4], 1
    %s514 = scalar_lea.sflag [#allocation4], 1
    %515 = vsyncpa %s514, 1

</llo_original>
